<compile_context>
chip_gen: v6e
topology: v6e:2x2x1
jax: 0.10.0
libtpu: 0.0.40
codegen_flags: <defaults>
</compile_context>

<pallas_src>
import functools

import jax
import jax.numpy as jnp
from jax.experimental import pallas as pl
from jax.experimental.pallas import tpu as pltpu

LEAKY_SLOPE = 0.01   # nn.LeakyReLU default negative_slope
BN_EPS = 1e-5        # nn.BatchNorm1d default eps
LANE = 128
SUBLANE = 8


def _leaky_relu(x):
    return jnp.where(x > 0, x, LEAKY_SLOPE * x)


def _round_up(n, m):
    return -(-n // m) * m


# ---------------------------------------------------------------------------
# Pallas kernel: projection_mlp (3 layers) + prediction_mlp (2 layers), fused.
# Linear bias + inference-mode BatchNorm are pre-folded into per-feature
# (scale, shift); dropout has p=0.0 (identity) in this module.
# ---------------------------------------------------------------------------
def simsiam_mlp_kernel(x_ref,
                       w1_ref, sc1_ref, sh1_ref,
                       w2_ref, sc2_ref, sh2_ref,
                       w3_ref, sc3_ref, sh3_ref,
                       w4_ref, sc4_ref, sh4_ref,
                       w5_ref, sc5_ref, sh5_ref,
                       z_ref, p_ref):
    def layer(h, w_ref, sc_ref, sh_ref, relu, out_dtype):
        # bf16 operands feed the MXU at full rate; accumulate + elementwise in f32
        # (v5e has no bf16 VPU/EUP, so keep the affine/relu math in f32).
        y = jnp.dot(h.astype(jnp.bfloat16), w_ref[...],
                    preferred_element_type=jnp.float32)
        y = y * sc_ref[...] + sh_ref[...]
        if relu:
            y = _leaky_relu(y)
        return y.astype(out_dtype)

    # Non-output intermediates are kept bf16: the next matmul consumes bf16 operands
    # anyway, so this halves spill / internal-scratch bytes with no accuracy change.
    h = layer(x_ref[...], w1_ref, sc1_ref, sh1_ref, True, jnp.bfloat16)   # proj fc1
    h = layer(h, w2_ref, sc2_ref, sh2_ref, True, jnp.bfloat16)            # proj fc2
    z = layer(h, w3_ref, sc3_ref, sh3_ref, False, jnp.float32)            # proj fc3 (BN, relu=None)
    z_ref[...] = z
    h = layer(z, w4_ref, sc4_ref, sh4_ref, True, jnp.bfloat16)            # pred fc1
    p_ref[...] = layer(h, w5_ref, sc5_ref, sh5_ref, False, jnp.float32)   # pred fc2 (no BN, relu=None)


def simsiam_mlps_pallas(x_flat, folded_params, *, tb=256):
    """x_flat: (Btot, in_dim) bf16 pooled features, in_dim a multiple of 128.

    Returns (z, p), both (Btot, padded_out) f32 (padded feature columns included).
    """
    btot, in_dim = x_flat.shape

    # Pad the batch to a multiple of the sublane count so no sub-sublane blocks /
    # masked partial-sublane stores are generated, then to a multiple of tb.
    bp = _round_up(btot, SUBLANE)
    tb = min(tb, bp)
    bp = _round_up(bp, tb)
    if bp != btot:
        x_flat = jnp.pad(x_flat, ((0, bp - btot), (0, 0)))

    flat_args = [x_flat]
    in_specs = [pl.BlockSpec((tb, in_dim), lambda i: (i, 0))]
    resident_bytes = 0
    for w, sc, sh in folded_params:
        flat_args += [w, sc, sh]
        # Constant block index + Buffered(1): weights/scales stay VMEM-resident across
        # the whole grid with a single buffer (default double-buffering is pure waste).
        in_specs += [
            pl.BlockSpec(w.shape, lambda i: (0, 0), pipeline_mode=pl.Buffered(1)),
            pl.BlockSpec(sc.shape, lambda i: (0, 0), pipeline_mode=pl.Buffered(1)),
            pl.BlockSpec(sh.shape, lambda i: (0, 0), pipeline_mode=pl.Buffered(1)),
        ]
        resident_bytes += (w.size * w.dtype.itemsize
                           + (sc.size + sh.size) * sc.dtype.itemsize)

    z_dim = folded_params[2][0].shape[1]   # projection fc3 output width (padded)
    p_dim = folded_params[4][0].shape[1]   # prediction fc2 output width (padded)
    out_shape = (jax.ShapeDtypeStruct((bp, z_dim), jnp.float32),
                 jax.ShapeDtypeStruct((bp, p_dim), jnp.float32))
    out_specs = (pl.BlockSpec((tb, z_dim), lambda i: (i, 0)),
                 pl.BlockSpec((tb, p_dim), lambda i: (i, 0)))

    # Explicit VMEM budget: single-buffered resident weights + double-buffered
    # x / z / p tiles + a few bf16 intermediates of the widest layer, plus headroom.
    max_w = max(max(w.shape) for w, _, _ in folded_params)
    x_tile_bytes = 2 * tb * in_dim * x_flat.dtype.itemsize          # double-buffered input
    out_tile_bytes = 2 * tb * (z_dim + p_dim) * 4                    # double-buffered z, p
    scratch_bytes = 4 * tb * max_w * 2                               # bf16 intermediates / spill
    vmem_limit = resident_bytes + x_tile_bytes + out_tile_bytes + scratch_bytes + (8 << 20)
    vmem_limit = int(min(128 << 20, max(32 << 20, vmem_limit)))

    flops = 2 * bp * sum(w.shape[0] * w.shape[1] for w, _, _ in folded_params)
    bytes_accessed = (bp * in_dim * x_flat.dtype.itemsize + resident_bytes
                      + bp * (z_dim + p_dim) * 4)

    z, p = pl.pallas_call(
        simsiam_mlp_kernel,
        out_shape=out_shape,
        grid=(bp // tb,),
        in_specs=in_specs,
        out_specs=out_specs,
        compiler_params=pltpu.CompilerParams(
            dimension_semantics=("parallel",),      # megacore batch sharding on v7x
            vmem_limit_bytes=vmem_limit),
        cost_estimate=pl.CostEstimate(flops=flops, transcendentals=0,
                                      bytes_accessed=bytes_accessed),
    )(*flat_args)
    return z[:btot], p[:btot]


# ---------------------------------------------------------------------------
# Plain-JAX feature path (cheap at these sizes; the MLPs are the hot path).
# ---------------------------------------------------------------------------
def feature_path(x_view, conv_w, wpool):
    """backbone.features stand-in + AdaptiveAvgPool2d((wpool, wpool)) + Flatten."""
    # TODO(synk): backbone.features is an opaque constructor argument in the torch
    # module; a deterministic 1x1-conv + leaky_relu stand-in is used so the
    # end-to-end forward runs.
    f = jnp.einsum('bchw,co->bohw', x_view, conv_w)
    f = _leaky_relu(f)
    b, c, h, w = f.shape
    f = f.reshape(b, c, wpool, h // wpool, wpool, w // wpool).mean(axis=(3, 5))
    return f.reshape(b, -1)


def simsiam_forward(x, conv_w, folded_params, wpool, out_d):
    b = x.shape[0]
    f1 = feature_path(x[:, [0]], conv_w, wpool)   # view 1
    f2 = feature_path(x[:, [1]], conv_w, wpool)   # view 2
    # Both views in one kernel call so the resident weights amortize over 2*B rows.
    feats = jnp.concatenate([f1, f2], axis=0)
    in_dim_k = folded_params[0][0].shape[0]        # lane-padded fc input width
    if in_dim_k != feats.shape[1]:
        feats = jnp.pad(feats, ((0, 0), (0, in_dim_k - feats.shape[1])))
    feats = feats.astype(jnp.bfloat16)             # halves x DMA + VMEM tile
    z, p = simsiam_mlps_pallas(feats, folded_params)
    z, p = z[:, :out_d], p[:, :out_d]              # strip lane padding (no-op if aligned)
    return z[:b], z[b:], p[:b], p[b:]


# ---------------------------------------------------------------------------
# Parameter construction (torch-like Linear init, inference-mode BN folding).
# All kernel-side dims are padded up to multiples of 128 (zero weight rows/cols,
# scale=1 / shift=0 on padded features) so every matmul / store is lane-dense.
# ---------------------------------------------------------------------------
def init_params(key, fc_i, proj_d, pred_d):
    """Returns (raw, folded).

    raw:    [(w (i,o) f32, b f32, (gamma,beta,mean,var)|None, relu: bool)]   -- reference
    folded: [(w bf16 (i_pad,o_pad), scale f32 (1,o_pad), shift f32 (1,o_pad))] -- kernel
    """
    layer_defs = [
        (fc_i,        proj_d,      True,  True),   # projection fc1: Linear+BN+LeakyReLU
        (proj_d,      proj_d,      True,  True),   # projection fc2: Linear+BN+LeakyReLU
        (proj_d,      pred_d,      True,  False),  # projection fc3: Linear+BN (relu=None)
        (pred_d,      pred_d // 4, True,  True),   # prediction fc1: Linear+BN+LeakyReLU
        (pred_d // 4, pred_d,      False, False),  # prediction fc2: Linear (no BN, relu=None)
    ]
    raw, folded = [], []
    for kd, (i, o, bn, relu) in zip(jax.random.split(key, len(layer_defs)), layer_defs):
        k = jax.random.split(kd, 6)
        bound = 1.0 / (i ** 0.5)
        w = jax.random.uniform(k[0], (i, o), jnp.float32, -bound, bound)
        b = jax.random.uniform(k[1], (o,), jnp.float32, -bound, bound)
        if bn:
            # TODO(synk): training-mode BatchNorm1d (batch statistics) not implemented;
            # inference-mode running stats are folded into scale/shift.
            gamma = 1.0 + 0.1 * jax.random.normal(k[2], (o,), jnp.float32)
            beta = 0.1 * jax.random.normal(k[3], (o,), jnp.float32)
            mean = 0.1 * jax.random.normal(k[4], (o,), jnp.float32)
            var = jax.random.uniform(k[5], (o,), jnp.float32, 0.5, 1.5)
            inv = gamma / jnp.sqrt(var + BN_EPS)
            scale, shift = inv, beta + (b - mean) * inv
            bn_params = (gamma, beta, mean, var)
        else:
            scale, shift = jnp.ones((o,), jnp.float32), b
            bn_params = None
        raw.append((w, b, bn_params, relu))

        i_pad, o_pad = _round_up(i, LANE), _round_up(o, LANE)
        w_pad = jnp.pad(w, ((0, i_pad - i), (0, o_pad - o))).astype(jnp.bfloat16)
        scale_pad = jnp.pad(scale, (0, o_pad - o), constant_values=1.0).reshape(1, o_pad)
        shift_pad = jnp.pad(shift, (0, o_pad - o)).reshape(1, o_pad)
        folded.append((w_pad, scale_pad, shift_pad))
    return raw, folded


def ref_mlps(xf, raw):
    """Pure-JAX f32 reference of projection_mlp + prediction_mlp (torch semantics)."""
    h, outs = xf, []
    for w, b, bn, relu in raw:
        y = h @ w + b
        if bn is not None:
            gamma, beta, mean, var = bn
            y = (y - mean) / jnp.sqrt(var + BN_EPS) * gamma + beta
        if relu:
            y = _leaky_relu(y)
        outs.append(y)
        h = y
    return outs[2], outs[4]   # (z, p)


if __name__ == "__main__":
    # Small shapes consistent with the module: dim 1 of x holds the two augmented views,
    # backbone features have 8*d = 16 channels, wpool = 4 -> fc_i = 16*4*4 = 256.
    B, H, W = 2, 16, 16
    wpool = 4
    feat_c = 16                      # 8 * d with d = 2
    fc_i = feat_c * wpool * wpool    # 256
    proj_d = 256                     # small stand-in for projection_d = 2048
    pred_d = 256                     # small stand-in for prediction_d = 2048
                                     # (pred_d // 4 = 64 gets lane-padded to 128 in the kernel)

    key = jax.random.PRNGKey(0)
    kx, kc, kp = jax.random.split(key, 3)
    x = jax.random.normal(kx, (B, 2, H, W), jnp.float32)
    conv_w = jax.random.normal(kc, (1, feat_c), jnp.float32)
    raw, folded = init_params(kp, fc_i, proj_d, pred_d)

    fwd = jax.jit(functools.partial(simsiam_forward, wpool=wpool, out_d=pred_d))
    z1, z2, p1, p2 = jax.block_until_ready(fwd(x, conv_w, folded))

    # Reference check (f32 everywhere); kernel uses bf16 matmul operands, so use a
    # normalized max-error metric instead of tight allclose.
    f1 = feature_path(x[:, [0]], conv_w, wpool)
    f2 = feature_path(x[:, [1]], conv_w, wpool)
    z1_ref, p1_ref = ref_mlps(f1, raw)
    z2_ref, p2_ref = ref_mlps(f2, raw)

    def rel_err(a, b):
        return float(jnp.max(jnp.abs(a - b)) / (jnp.max(jnp.abs(b)) + 1e-6))

    assert z1.shape == (B, pred_d) and z2.shape == (B, pred_d)
    assert p1.shape == (B, pred_d) and p2.shape == (B, pred_d)
    for got, want in ((z1, z1_ref), (z2, z2_ref), (p1, p1_ref), (p2, p2_ref)):
        assert bool(jnp.all(jnp.isfinite(got)))
        assert rel_err(got, want) < 5e-2, rel_err(got, want)

    print("KERNEL_OK")
</pallas_src>

<mosaic_0001>
module attributes {stable_mosaic.version = 11 : i64} {
  func.func @simsiam_mlp_kernel(%arg0: i32, %arg1: memref<8x256xbf16, #tpu.memory_space<vmem>>, %arg2: memref<256x256xbf16, #tpu.memory_space<vmem>>, %arg3: memref<1x256xf32, #tpu.memory_space<vmem>>, %arg4: memref<1x256xf32, #tpu.memory_space<vmem>>, %arg5: memref<256x256xbf16, #tpu.memory_space<vmem>>, %arg6: memref<1x256xf32, #tpu.memory_space<vmem>>, %arg7: memref<1x256xf32, #tpu.memory_space<vmem>>, %arg8: memref<256x256xbf16, #tpu.memory_space<vmem>>, %arg9: memref<1x256xf32, #tpu.memory_space<vmem>>, %arg10: memref<1x256xf32, #tpu.memory_space<vmem>>, %arg11: memref<256x128xbf16, #tpu.memory_space<vmem>>, %arg12: memref<1x128xf32, #tpu.memory_space<vmem>>, %arg13: memref<1x128xf32, #tpu.memory_space<vmem>>, %arg14: memref<128x256xbf16, #tpu.memory_space<vmem>>, %arg15: memref<1x256xf32, #tpu.memory_space<vmem>>, %arg16: memref<1x256xf32, #tpu.memory_space<vmem>>, %arg17: memref<8x256xf32, #tpu.memory_space<vmem>>, %arg18: memref<8x256xf32, #tpu.memory_space<vmem>>) attributes {dimension_semantics = [#tpu.dimension_semantics<parallel>], iteration_bounds = array<i64: 1>, scalar_prefetch = 0 : i64, scratch_operands = 0 : i64, tpu.core_type = #tpu.core_type<tc>, window_params = [{transform_indices = @transform_0, window_bounds = array<i64: 8, 256>}, {pipeline_mode = #tpu.pipeline_mode<synchronous>, transform_indices = @transform_1, window_bounds = array<i64: 256, 256>}, {pipeline_mode = #tpu.pipeline_mode<synchronous>, transform_indices = @transform_2, window_bounds = array<i64: 1, 256>}, {pipeline_mode = #tpu.pipeline_mode<synchronous>, transform_indices = @transform_3, window_bounds = array<i64: 1, 256>}, {pipeline_mode = #tpu.pipeline_mode<synchronous>, transform_indices = @transform_4, window_bounds = array<i64: 256, 256>}, {pipeline_mode = #tpu.pipeline_mode<synchronous>, transform_indices = @transform_5, window_bounds = array<i64: 1, 256>}, {pipeline_mode = #tpu.pipeline_mode<synchronous>, transform_indices = @transform_6, window_bounds = array<i64: 1, 256>}, {pipeline_mode = #tpu.pipeline_mode<synchronous>, transform_indices = @transform_7, window_bounds = array<i64: 256, 256>}, {pipeline_mode = #tpu.pipeline_mode<synchronous>, transform_indices = @transform_8, window_bounds = array<i64: 1, 256>}, {pipeline_mode = #tpu.pipeline_mode<synchronous>, transform_indices = @transform_9, window_bounds = array<i64: 1, 256>}, {pipeline_mode = #tpu.pipeline_mode<synchronous>, transform_indices = @transform_10, window_bounds = array<i64: 256, 128>}, {pipeline_mode = #tpu.pipeline_mode<synchronous>, transform_indices = @transform_11, window_bounds = array<i64: 1, 128>}, {pipeline_mode = #tpu.pipeline_mode<synchronous>, transform_indices = @transform_12, window_bounds = array<i64: 1, 128>}, {pipeline_mode = #tpu.pipeline_mode<synchronous>, transform_indices = @transform_13, window_bounds = array<i64: 128, 256>}, {pipeline_mode = #tpu.pipeline_mode<synchronous>, transform_indices = @transform_14, window_bounds = array<i64: 1, 256>}, {pipeline_mode = #tpu.pipeline_mode<synchronous>, transform_indices = @transform_15, window_bounds = array<i64: 1, 256>}, {transform_indices = @transform_16, window_bounds = array<i64: 8, 256>}, {transform_indices = @transform_17, window_bounds = array<i64: 8, 256>}]} {
    %c0 = arith.constant 0 : index
    %c0_0 = arith.constant 0 : index
    %0 = vector.load %arg1[%c0, %c0_0] : memref<8x256xbf16, #tpu.memory_space<vmem>>, vector<8x256xbf16>
    %c0_1 = arith.constant 0 : index
    %c0_2 = arith.constant 0 : index
    %1 = vector.load %arg2[%c0_1, %c0_2] : memref<256x256xbf16, #tpu.memory_space<vmem>>, vector<256x256xbf16>
    %cst = arith.constant dense<0.000000e+00> : vector<8x256xf32>
    %2 = tpu.matmul %0, %1, %cst {dimension_numbers = #tpu.dot_dimension_numbers<[1], [0], [0], [1], [0, 0, 1, 1], [], []>} : vector<8x256xbf16>, vector<256x256xbf16>, vector<8x256xf32> -> vector<8x256xf32>
    %c0_3 = arith.constant 0 : index
    %c0_4 = arith.constant 0 : index
    %3 = vector.load %arg3[%c0_3, %c0_4] : memref<1x256xf32, #tpu.memory_space<vmem>>, vector<1x256xf32>
    %4 = vector.broadcast %3 : vector<1x256xf32> to vector<8x256xf32>
    %5 = arith.mulf %2, %4 : vector<8x256xf32>
    %c0_5 = arith.constant 0 : index
    %c0_6 = arith.constant 0 : index
    %6 = vector.load %arg4[%c0_5, %c0_6] : memref<1x256xf32, #tpu.memory_space<vmem>>, vector<1x256xf32>
    %7 = vector.broadcast %6 : vector<1x256xf32> to vector<8x256xf32>
    %8 = arith.addf %5, %7 : vector<8x256xf32>
    %cst_7 = arith.constant 0.000000e+00 : f32
    %9 = vector.broadcast %cst_7 : f32 to vector<8x256xf32>
    %10 = arith.cmpf ogt, %8, %9 : vector<8x256xf32>
    %cst_8 = arith.constant 0.00999999977 : f32
    %11 = vector.broadcast %cst_8 : f32 to vector<8x256xf32>
    %12 = arith.mulf %11, %8 : vector<8x256xf32>
    %13 = arith.select %10, %8, %12 : vector<8x256xi1>, vector<8x256xf32>
    %14 = arith.truncf %13 : vector<8x256xf32> to vector<8x256xbf16>
    %c0_9 = arith.constant 0 : index
    %c0_10 = arith.constant 0 : index
    %15 = vector.load %arg5[%c0_9, %c0_10] : memref<256x256xbf16, #tpu.memory_space<vmem>>, vector<256x256xbf16>
    %cst_11 = arith.constant dense<0.000000e+00> : vector<8x256xf32>
    %16 = tpu.matmul %14, %15, %cst_11 {dimension_numbers = #tpu.dot_dimension_numbers<[1], [0], [0], [1], [0, 0, 1, 1], [], []>} : vector<8x256xbf16>, vector<256x256xbf16>, vector<8x256xf32> -> vector<8x256xf32>
    %c0_12 = arith.constant 0 : index
    %c0_13 = arith.constant 0 : index
    %17 = vector.load %arg6[%c0_12, %c0_13] : memref<1x256xf32, #tpu.memory_space<vmem>>, vector<1x256xf32>
    %18 = vector.broadcast %17 : vector<1x256xf32> to vector<8x256xf32>
    %19 = arith.mulf %16, %18 : vector<8x256xf32>
    %c0_14 = arith.constant 0 : index
    %c0_15 = arith.constant 0 : index
    %20 = vector.load %arg7[%c0_14, %c0_15] : memref<1x256xf32, #tpu.memory_space<vmem>>, vector<1x256xf32>
    %21 = vector.broadcast %20 : vector<1x256xf32> to vector<8x256xf32>
    %22 = arith.addf %19, %21 : vector<8x256xf32>
    %cst_16 = arith.constant 0.000000e+00 : f32
    %23 = vector.broadcast %cst_16 : f32 to vector<8x256xf32>
    %24 = arith.cmpf ogt, %22, %23 : vector<8x256xf32>
    %cst_17 = arith.constant 0.00999999977 : f32
    %25 = vector.broadcast %cst_17 : f32 to vector<8x256xf32>
    %26 = arith.mulf %25, %22 : vector<8x256xf32>
    %27 = arith.select %24, %22, %26 : vector<8x256xi1>, vector<8x256xf32>
    %28 = arith.truncf %27 : vector<8x256xf32> to vector<8x256xbf16>
    %c0_18 = arith.constant 0 : index
    %c0_19 = arith.constant 0 : index
    %29 = vector.load %arg8[%c0_18, %c0_19] : memref<256x256xbf16, #tpu.memory_space<vmem>>, vector<256x256xbf16>
    %cst_20 = arith.constant dense<0.000000e+00> : vector<8x256xf32>
    %30 = tpu.matmul %28, %29, %cst_20 {dimension_numbers = #tpu.dot_dimension_numbers<[1], [0], [0], [1], [0, 0, 1, 1], [], []>} : vector<8x256xbf16>, vector<256x256xbf16>, vector<8x256xf32> -> vector<8x256xf32>
    %c0_21 = arith.constant 0 : index
    %c0_22 = arith.constant 0 : index
    %31 = vector.load %arg9[%c0_21, %c0_22] : memref<1x256xf32, #tpu.memory_space<vmem>>, vector<1x256xf32>
    %32 = vector.broadcast %31 : vector<1x256xf32> to vector<8x256xf32>
    %33 = arith.mulf %30, %32 : vector<8x256xf32>
    %c0_23 = arith.constant 0 : index
    %c0_24 = arith.constant 0 : index
    %34 = vector.load %arg10[%c0_23, %c0_24] : memref<1x256xf32, #tpu.memory_space<vmem>>, vector<1x256xf32>
    %35 = vector.broadcast %34 : vector<1x256xf32> to vector<8x256xf32>
    %36 = arith.addf %33, %35 : vector<8x256xf32>
    %c0_25 = arith.constant 0 : index
    %c0_26 = arith.constant 0 : index
    %37 = vector.load %arg17[%c0_25, %c0_26] : memref<8x256xf32, #tpu.memory_space<vmem>>, vector<8x256xf32>
    tpu.vector_store %arg17[%c0_25, %c0_26], %36 {strides = array<i32>} : memref<8x256xf32, #tpu.memory_space<vmem>>, vector<8x256xf32>,
    %38 = arith.truncf %36 : vector<8x256xf32> to vector<8x256xbf16>
    %c0_27 = arith.constant 0 : index
    %c0_28 = arith.constant 0 : index
    %39 = vector.load %arg11[%c0_27, %c0_28] : memref<256x128xbf16, #tpu.memory_space<vmem>>, vector<256x128xbf16>
    %cst_29 = arith.constant dense<0.000000e+00> : vector<8x128xf32>
    %40 = tpu.matmul %38, %39, %cst_29 {dimension_numbers = #tpu.dot_dimension_numbers<[1], [0], [0], [1], [0, 0, 1, 1], [], []>} : vector<8x256xbf16>, vector<256x128xbf16>, vector<8x128xf32> -> vector<8x128xf32>
    %c0_30 = arith.constant 0 : index
    %c0_31 = arith.constant 0 : index
    %41 = vector.load %arg12[%c0_30, %c0_31] : memref<1x128xf32, #tpu.memory_space<vmem>>, vector<1x128xf32>
    %42 = vector.broadcast %41 : vector<1x128xf32> to vector<8x128xf32>
    %43 = arith.mulf %40, %42 : vector<8x128xf32>
    %c0_32 = arith.constant 0 : index
    %c0_33 = arith.constant 0 : index
    %44 = vector.load %arg13[%c0_32, %c0_33] : memref<1x128xf32, #tpu.memory_space<vmem>>, vector<1x128xf32>
    %45 = vector.broadcast %44 : vector<1x128xf32> to vector<8x128xf32>
    %46 = arith.addf %43, %45 : vector<8x128xf32>
    %cst_34 = arith.constant 0.000000e+00 : f32
    %47 = vector.broadcast %cst_34 : f32 to vector<8x128xf32>
    %48 = arith.cmpf ogt, %46, %47 : vector<8x128xf32>
    %cst_35 = arith.constant 0.00999999977 : f32
    %49 = vector.broadcast %cst_35 : f32 to vector<8x128xf32>
    %50 = arith.mulf %49, %46 : vector<8x128xf32>
    %51 = arith.select %48, %46, %50 : vector<8x128xi1>, vector<8x128xf32>
    %52 = arith.truncf %51 : vector<8x128xf32> to vector<8x128xbf16>
    %c0_36 = arith.constant 0 : index
    %c0_37 = arith.constant 0 : index
    %53 = vector.load %arg14[%c0_36, %c0_37] : memref<128x256xbf16, #tpu.memory_space<vmem>>, vector<128x256xbf16>
    %cst_38 = arith.constant dense<0.000000e+00> : vector<8x256xf32>
    %54 = tpu.matmul %52, %53, %cst_38 {dimension_numbers = #tpu.dot_dimension_numbers<[1], [0], [0], [1], [0, 0, 1, 1], [], []>} : vector<8x128xbf16>, vector<128x256xbf16>, vector<8x256xf32> -> vector<8x256xf32>
    %c0_39 = arith.constant 0 : index
    %c0_40 = arith.constant 0 : index
    %55 = vector.load %arg15[%c0_39, %c0_40] : memref<1x256xf32, #tpu.memory_space<vmem>>, vector<1x256xf32>
    %56 = vector.broadcast %55 : vector<1x256xf32> to vector<8x256xf32>
    %57 = arith.mulf %54, %56 : vector<8x256xf32>
    %c0_41 = arith.constant 0 : index
    %c0_42 = arith.constant 0 : index
    %58 = vector.load %arg16[%c0_41, %c0_42] : memref<1x256xf32, #tpu.memory_space<vmem>>, vector<1x256xf32>
    %59 = vector.broadcast %58 : vector<1x256xf32> to vector<8x256xf32>
    %60 = arith.addf %57, %59 : vector<8x256xf32>
    %c0_43 = arith.constant 0 : index
    %c0_44 = arith.constant 0 : index
    %61 = vector.load %arg18[%c0_43, %c0_44] : memref<8x256xf32, #tpu.memory_space<vmem>>, vector<8x256xf32>
    tpu.vector_store %arg18[%c0_43, %c0_44], %60 {strides = array<i32>} : memref<8x256xf32, #tpu.memory_space<vmem>>, vector<8x256xf32>,
    return
  }
  func.func @transform_0(%arg0: i32) -> (i32, i32) {
    %c0_i32 = arith.constant 0 : i32
    %c0_i32_0 = arith.constant 0 : i32
    return %arg0, %c0_i32 : i32, i32
  }
  func.func @transform_1(%arg0: i32) -> (i32, i32) {
    %c0_i32 = arith.constant 0 : i32
    %c0_i32_0 = arith.constant 0 : i32
    %c0_i32_1 = arith.constant 0 : i32
    return %c0_i32, %c0_i32_0 : i32, i32
  }
  func.func @transform_2(%arg0: i32) -> (i32, i32) {
    %c0_i32 = arith.constant 0 : i32
    %c0_i32_0 = arith.constant 0 : i32
    %c0_i32_1 = arith.constant 0 : i32
    return %c0_i32, %c0_i32_0 : i32, i32
  }
  func.func @transform_3(%arg0: i32) -> (i32, i32) {
    %c0_i32 = arith.constant 0 : i32
    %c0_i32_0 = arith.constant 0 : i32
    %c0_i32_1 = arith.constant 0 : i32
    return %c0_i32, %c0_i32_0 : i32, i32
  }
  func.func @transform_4(%arg0: i32) -> (i32, i32) {
    %c0_i32 = arith.constant 0 : i32
    %c0_i32_0 = arith.constant 0 : i32
    %c0_i32_1 = arith.constant 0 : i32
    return %c0_i32, %c0_i32_0 : i32, i32
  }
  func.func @transform_5(%arg0: i32) -> (i32, i32) {
    %c0_i32 = arith.constant 0 : i32
    %c0_i32_0 = arith.constant 0 : i32
    %c0_i32_1 = arith.constant 0 : i32
    return %c0_i32, %c0_i32_0 : i32, i32
  }
  func.func @transform_6(%arg0: i32) -> (i32, i32) {
    %c0_i32 = arith.constant 0 : i32
    %c0_i32_0 = arith.constant 0 : i32
    %c0_i32_1 = arith.constant 0 : i32
    return %c0_i32, %c0_i32_0 : i32, i32
  }
  func.func @transform_7(%arg0: i32) -> (i32, i32) {
    %c0_i32 = arith.constant 0 : i32
    %c0_i32_0 = arith.constant 0 : i32
    %c0_i32_1 = arith.constant 0 : i32
    return %c0_i32, %c0_i32_0 : i32, i32
  }
  func.func @transform_8(%arg0: i32) -> (i32, i32) {
    %c0_i32 = arith.constant 0 : i32
    %c0_i32_0 = arith.constant 0 : i32
    %c0_i32_1 = arith.constant 0 : i32
    return %c0_i32, %c0_i32_0 : i32, i32
  }
  func.func @transform_9(%arg0: i32) -> (i32, i32) {
    %c0_i32 = arith.constant 0 : i32
    %c0_i32_0 = arith.constant 0 : i32
    %c0_i32_1 = arith.constant 0 : i32
    return %c0_i32, %c0_i32_0 : i32, i32
  }
  func.func @transform_10(%arg0: i32) -> (i32, i32) {
    %c0_i32 = arith.constant 0 : i32
    %c0_i32_0 = arith.constant 0 : i32
    %c0_i32_1 = arith.constant 0 : i32
    return %c0_i32, %c0_i32_0 : i32, i32
  }
  func.func @transform_11(%arg0: i32) -> (i32, i32) {
    %c0_i32 = arith.constant 0 : i32
    %c0_i32_0 = arith.constant 0 : i32
    %c0_i32_1 = arith.constant 0 : i32
    return %c0_i32, %c0_i32_0 : i32, i32
  }
  func.func @transform_12(%arg0: i32) -> (i32, i32) {
    %c0_i32 = arith.constant 0 : i32
    %c0_i32_0 = arith.constant 0 : i32
    %c0_i32_1 = arith.constant 0 : i32
    return %c0_i32, %c0_i32_0 : i32, i32
  }
  func.func @transform_13(%arg0: i32) -> (i32, i32) {
    %c0_i32 = arith.constant 0 : i32
    %c0_i32_0 = arith.constant 0 : i32
    %c0_i32_1 = arith.constant 0 : i32
    return %c0_i32, %c0_i32_0 : i32, i32
  }
  func.func @transform_14(%arg0: i32) -> (i32, i32) {
    %c0_i32 = arith.constant 0 : i32
    %c0_i32_0 = arith.constant 0 : i32
    %c0_i32_1 = arith.constant 0 : i32
    return %c0_i32, %c0_i32_0 : i32, i32
  }
  func.func @transform_15(%arg0: i32) -> (i32, i32) {
    %c0_i32 = arith.constant 0 : i32
    %c0_i32_0 = arith.constant 0 : i32
    %c0_i32_1 = arith.constant 0 : i32
    return %c0_i32, %c0_i32_0 : i32, i32
  }
  func.func @transform_16(%arg0: i32) -> (i32, i32) {
    %c0_i32 = arith.constant 0 : i32
    %c0_i32_0 = arith.constant 0 : i32
    return %arg0, %c0_i32 : i32, i32
  }
  func.func @transform_17(%arg0: i32) -> (i32, i32) {
    %c0_i32 = arith.constant 0 : i32
    %c0_i32_0 = arith.constant 0 : i32
    return %arg0, %c0_i32 : i32, i32
  }
}

</mosaic_0001>

<llo_original>
// kernel: simsiam_forward.1
$region0: #{simsiam_forward.1}
  #allocation0 [shape = 'u32[]', space=smem, size = 0x4, offset = 0x4, fixed_abs, tag = 'smem constant byte address 0x4 - core index']
  #allocation1 [shape = 'u32[144,128]{1,0:T(1,128)}', space=vmem, size = 0x12000, scoped, tag = 'internal scratch']
  %s0 = inlined_call_operand.vmem [shape: bf16[8,256], index: 0, kind: input, shape index: {}]
  %s1 = inlined_call_operand.vmem [shape: bf16[256,256], index: 1, kind: input, shape index: {}]
  %s2 = inlined_call_operand.vmem [shape: f32[1,256], index: 2, kind: input, shape index: {}]
  %s3 = inlined_call_operand.vmem [shape: f32[1,256], index: 3, kind: input, shape index: {}]
  %s4 = inlined_call_operand.vmem [shape: bf16[256,256], index: 4, kind: input, shape index: {}]
  %s5 = inlined_call_operand.vmem [shape: f32[1,256], index: 5, kind: input, shape index: {}]
  %s6 = inlined_call_operand.vmem [shape: f32[1,256], index: 6, kind: input, shape index: {}]
  %s7 = inlined_call_operand.vmem [shape: bf16[256,256], index: 7, kind: input, shape index: {}]
  %s8 = inlined_call_operand.vmem [shape: f32[1,256], index: 8, kind: input, shape index: {}]
  %s9 = inlined_call_operand.vmem [shape: f32[1,256], index: 9, kind: input, shape index: {}]
  %s10 = inlined_call_operand.vmem [shape: bf16[256,128], index: 10, kind: input, shape index: {}]
  %s11 = inlined_call_operand.vmem [shape: f32[1,128], index: 11, kind: input, shape index: {}]
  %s12 = inlined_call_operand.vmem [shape: f32[1,128], index: 12, kind: input, shape index: {}]
  %s13 = inlined_call_operand.vmem [shape: bf16[128,256], index: 13, kind: input, shape index: {}]
  %s14 = inlined_call_operand.vmem [shape: f32[1,256], index: 14, kind: input, shape index: {}]
  %s15 = inlined_call_operand.vmem [shape: f32[1,256], index: 15, kind: input, shape index: {}]
  %s16 = inlined_call_operand.vmem [shape: f32[8,256], index: 16, kind: output, shape index: {0}]
  %s17 = inlined_call_operand.vmem [shape: f32[8,256], index: 17, kind: output, shape index: {1}]
  %18 = xla_tuple %s16, %s17
  %s19 = sld [smem:[#allocation0]]
  $region82: #{simsiam_forward.1} parent=0
    _
  %s21 = ssub.s32 1, %s19
  %s22 = scalar_select 0, %s21, %s19
  // Predicated region
  $region2: #{simsiam_forward.1} parent=0 // pred_check
    _
  $region3: #{simsiam_forward.1} parent=0 // pred_check_branch
    %24 = sbr.rel (0) target = $region5
  $region4: #{simsiam_forward.1} parent=0 // pred_region
    _
  $region5: #{simsiam_forward.1} parent=0 // pred_fallthru
    _
  // Predicated region
  $region6: #{simsiam_forward.1} parent=0 // pred_check
    _
  $region7: #{simsiam_forward.1} parent=0 // pred_check_branch
    %26 = sbr.rel (0) target = $region9
  $region8: #{simsiam_forward.1} parent=0 // pred_region
    _
  $region9: #{simsiam_forward.1} parent=0 // pred_fallthru
    _
  // Predicated region
  $region10: #{simsiam_forward.1} parent=0 // pred_check
    _
  $region11: #{simsiam_forward.1} parent=0 // pred_check_branch
    %28 = sbr.rel (0) target = $region13
  $region12: #{simsiam_forward.1} parent=0 // pred_region
    _
  $region13: #{simsiam_forward.1} parent=0 // pred_fallthru
    _
  // Predicated region
  $region14: #{simsiam_forward.1} parent=0 // pred_check
    _
  $region15: #{simsiam_forward.1} parent=0 // pred_check_branch
    %30 = sbr.rel (0) target = $region17
  $region16: #{simsiam_forward.1} parent=0 // pred_region
    _
  $region17: #{simsiam_forward.1} parent=0 // pred_fallthru
    _
  // Predicated region
  $region18: #{simsiam_forward.1} parent=0 // pred_check
    _
  $region19: #{simsiam_forward.1} parent=0 // pred_check_branch
    %32 = sbr.rel (0) target = $region21
  $region20: #{simsiam_forward.1} parent=0 // pred_region
    _
  $region21: #{simsiam_forward.1} parent=0 // pred_fallthru
    _
  // Predicated region
  $region22: #{simsiam_forward.1} parent=0 // pred_check
    _
  $region23: #{simsiam_forward.1} parent=0 // pred_check_branch
    %34 = sbr.rel (0) target = $region25
  $region24: #{simsiam_forward.1} parent=0 // pred_region
    _
  $region25: #{simsiam_forward.1} parent=0 // pred_fallthru
    _
  // Predicated region
  $region26: #{simsiam_forward.1} parent=0 // pred_check
    _
  $region27: #{simsiam_forward.1} parent=0 // pred_check_branch
    %36 = sbr.rel (0) target = $region29
  $region28: #{simsiam_forward.1} parent=0 // pred_region
    _
  $region29: #{simsiam_forward.1} parent=0 // pred_fallthru
    _
  // Predicated region
  $region30: #{simsiam_forward.1} parent=0 // pred_check
    _
  $region31: #{simsiam_forward.1} parent=0 // pred_check_branch
    %38 = sbr.rel (0) target = $region33
  $region32: #{simsiam_forward.1} parent=0 // pred_region
    _
  $region33: #{simsiam_forward.1} parent=0 // pred_fallthru
    _
  // Predicated region
  $region34: #{simsiam_forward.1} parent=0 // pred_check
    _
  $region35: #{simsiam_forward.1} parent=0 // pred_check_branch
    %40 = sbr.rel (0) target = $region37
  $region36: #{simsiam_forward.1} parent=0 // pred_region
    _
  $region37: #{simsiam_forward.1} parent=0 // pred_fallthru
    _
  // Predicated region
  $region38: #{simsiam_forward.1} parent=0 // pred_check
    _
  $region39: #{simsiam_forward.1} parent=0 // pred_check_branch
    %42 = sbr.rel (0) target = $region41
  $region40: #{simsiam_forward.1} parent=0 // pred_region
    _
  $region41: #{simsiam_forward.1} parent=0 // pred_fallthru
    _
  // Predicated region
  $region42: #{simsiam_forward.1} parent=0 // pred_check
    _
  $region43: #{simsiam_forward.1} parent=0 // pred_check_branch
    %44 = sbr.rel (0) target = $region45
  $region44: #{simsiam_forward.1} parent=0 // pred_region
    _
  $region45: #{simsiam_forward.1} parent=0 // pred_fallthru
    _
  // Predicated region
  $region46: #{simsiam_forward.1} parent=0 // pred_check
    _
  $region47: #{simsiam_forward.1} parent=0 // pred_check_branch
    %46 = sbr.rel (0) target = $region49
  $region48: #{simsiam_forward.1} parent=0 // pred_region
    _
  $region49: #{simsiam_forward.1} parent=0 // pred_fallthru
    _
  // Predicated region
  $region50: #{simsiam_forward.1} parent=0 // pred_check
    _
  $region51: #{simsiam_forward.1} parent=0 // pred_check_branch
    %48 = sbr.rel (0) target = $region53
  $region52: #{simsiam_forward.1} parent=0 // pred_region
    _
  $region53: #{simsiam_forward.1} parent=0 // pred_fallthru
    _
  // Predicated region
  $region54: #{simsiam_forward.1} parent=0 // pred_check
    _
  $region55: #{simsiam_forward.1} parent=0 // pred_check_branch
    %50 = sbr.rel (0) target = $region57
  $region56: #{simsiam_forward.1} parent=0 // pred_region
    _
  $region57: #{simsiam_forward.1} parent=0 // pred_fallthru
    _
  // Predicated region
  $region58: #{simsiam_forward.1} parent=0 // pred_check
    _
  $region59: #{simsiam_forward.1} parent=0 // pred_check_branch
    %52 = sbr.rel (0) target = $region61
  $region60: #{simsiam_forward.1} parent=0 // pred_region
    _
  $region61: #{simsiam_forward.1} parent=0 // pred_fallthru
    _
  // Predicated region
  $region62: #{simsiam_forward.1} parent=0 // pred_check
    _
  $region63: #{simsiam_forward.1} parent=0 // pred_check_branch
    %54 = sbr.rel (0) target = $region65
  $region64: #{simsiam_forward.1} parent=0 // pred_region
    _
  $region65: #{simsiam_forward.1} parent=0 // pred_fallthru
    _
  %v56 = vld [vmem:[%s0] sm:$0xff]
  %v57 = vld [vmem:[%s1] sm:$0xff]
  %v58 = vld [vmem:[%s1 + $0x8] sm:$0xff]
  %v59 = vld [vmem:[%s1 + $0x10] sm:$0xff]
  %v60 = vld [vmem:[%s1 + $0x18] sm:$0xff]
  %v61 = vld [vmem:[%s1 + $0x20] sm:$0xff]
  %v62 = vld [vmem:[%s1 + $0x28] sm:$0xff]
  %v63 = vld [vmem:[%s1 + $0x30] sm:$0xff]
  %v64 = vld [vmem:[%s1 + $0x38] sm:$0xff]
  %v65 = vld [vmem:[%s1 + $0x40] sm:$0xff]
  %v66 = vld [vmem:[%s1 + $0x48] sm:$0xff]
  %v67 = vld [vmem:[%s1 + $0x50] sm:$0xff]
  %v68 = vld [vmem:[%s1 + $0x58] sm:$0xff]
  %v69 = vld [vmem:[%s1 + $0x60] sm:$0xff]
  %v70 = vld [vmem:[%s1 + $0x68] sm:$0xff]
  %v71 = vld [vmem:[%s1 + $0x70] sm:$0xff]
  %v72 = vld [vmem:[%s1 + $0x78] sm:$0xff]
  %v73 = vld [vmem:[%s1 + $0x80] sm:$0xff]
  %v74 = vld [vmem:[%s1 + $0x88] sm:$0xff]
  %v75 = vld [vmem:[%s1 + $0x90] sm:$0xff]
  %v76 = vld [vmem:[%s1 + $0x98] sm:$0xff]
  %v77 = vld [vmem:[%s1 + $0xa0] sm:$0xff]
  %v78 = vld [vmem:[%s1 + $0xa8] sm:$0xff]
  %v79 = vld [vmem:[%s1 + $0xb0] sm:$0xff]
  %v80 = vld [vmem:[%s1 + $0xb8] sm:$0xff]
  %v81 = vld [vmem:[%s1 + $0xc0] sm:$0xff]
  %v82 = vld [vmem:[%s1 + $0xc8] sm:$0xff]
  %v83 = vld [vmem:[%s1 + $0xd0] sm:$0xff]
  %v84 = vld [vmem:[%s1 + $0xd8] sm:$0xff]
  %v85 = vld [vmem:[%s1 + $0xe0] sm:$0xff]
  %v86 = vld [vmem:[%s1 + $0xe8] sm:$0xff]
  %v87 = vld [vmem:[%s1 + $0xf0] sm:$0xff]
  %v88 = vld [vmem:[%s1 + $0xf8] sm:$0xff]
  %v90 = vunpack.c.l.b16 %v56
  %v91 = vunpack.c.h.b16 %v56
  %v92 = vpack.c.b16 %v90, %v90
  %v93 = vpack.c.b16 %v91, %v91
  %v128 = vunpack.c.l.b16 %v57
  %v129 = vunpack.c.h.b16 %v57
  %v130 = vunpack.c.l.b16 %v58
  %v131 = vunpack.c.h.b16 %v58
  %v132 = vunpack.c.l.b16 %v59
  %v133 = vunpack.c.h.b16 %v59
  %v134 = vunpack.c.l.b16 %v60
  %v135 = vunpack.c.h.b16 %v60
  %v136 = vunpack.c.l.b16 %v61
  %v137 = vunpack.c.h.b16 %v61
  %v138 = vunpack.c.l.b16 %v62
  %v139 = vunpack.c.h.b16 %v62
  %v140 = vunpack.c.l.b16 %v63
  %v141 = vunpack.c.h.b16 %v63
  %v142 = vunpack.c.l.b16 %v64
  %v143 = vunpack.c.h.b16 %v64
  %v144 = vunpack.c.l.b16 %v65
  %v145 = vunpack.c.h.b16 %v65
  %v146 = vunpack.c.l.b16 %v66
  %v147 = vunpack.c.h.b16 %v66
  %v148 = vunpack.c.l.b16 %v67
  %v149 = vunpack.c.h.b16 %v67
  %v150 = vunpack.c.l.b16 %v68
  %v151 = vunpack.c.h.b16 %v68
  %v152 = vunpack.c.l.b16 %v69
  %v153 = vunpack.c.h.b16 %v69
  %v154 = vunpack.c.l.b16 %v70
  %v155 = vunpack.c.h.b16 %v70
  %v156 = vunpack.c.l.b16 %v71
  %v157 = vunpack.c.h.b16 %v71
  %v158 = vunpack.c.l.b16 %v72
  %v159 = vunpack.c.h.b16 %v72
  %v160 = vunpack.c.l.b16 %v73
  %v161 = vunpack.c.h.b16 %v73
  %v162 = vunpack.c.l.b16 %v74
  %v163 = vunpack.c.h.b16 %v74
  %v164 = vunpack.c.l.b16 %v75
  %v165 = vunpack.c.h.b16 %v75
  %v166 = vunpack.c.l.b16 %v76
  %v167 = vunpack.c.h.b16 %v76
  %v168 = vunpack.c.l.b16 %v77
  %v169 = vunpack.c.h.b16 %v77
  %v170 = vunpack.c.l.b16 %v78
  %v171 = vunpack.c.h.b16 %v78
  %v172 = vunpack.c.l.b16 %v79
  %v173 = vunpack.c.h.b16 %v79
  %v174 = vunpack.c.l.b16 %v80
  %v175 = vunpack.c.h.b16 %v80
  %v176 = vunpack.c.l.b16 %v81
  %v177 = vunpack.c.h.b16 %v81
  %v178 = vunpack.c.l.b16 %v82
  %v179 = vunpack.c.h.b16 %v82
  %v180 = vunpack.c.l.b16 %v83
  %v181 = vunpack.c.h.b16 %v83
  %v182 = vunpack.c.l.b16 %v84
  %v183 = vunpack.c.h.b16 %v84
  %v184 = vunpack.c.l.b16 %v85
  %v185 = vunpack.c.h.b16 %v85
  %v186 = vunpack.c.l.b16 %v86
  %v187 = vunpack.c.h.b16 %v86
  %v188 = vunpack.c.l.b16 %v87
  %v189 = vunpack.c.h.b16 %v87
  %v190 = vunpack.c.l.b16 %v88
  %v191 = vunpack.c.h.b16 %v88
  %v192 = vpack.c.b16 %v130, %v128
  %v193 = vpack.c.b16 %v131, %v129
  %v194 = vpack.c.b16 %v134, %v132
  %v195 = vpack.c.b16 %v135, %v133
  %v196 = vpack.c.b16 %v138, %v136
  %v197 = vpack.c.b16 %v139, %v137
  %v198 = vpack.c.b16 %v142, %v140
  %v199 = vpack.c.b16 %v143, %v141
  %v200 = vpack.c.b16 %v146, %v144
  %v201 = vpack.c.b16 %v147, %v145
  %v202 = vpack.c.b16 %v150, %v148
  %v203 = vpack.c.b16 %v151, %v149
  %v204 = vpack.c.b16 %v154, %v152
  %v205 = vpack.c.b16 %v155, %v153
  %v206 = vpack.c.b16 %v158, %v156
  %v207 = vpack.c.b16 %v159, %v157
  %v208 = vpack.c.b16 %v162, %v160
  %v209 = vpack.c.b16 %v163, %v161
  %v210 = vpack.c.b16 %v166, %v164
  %v211 = vpack.c.b16 %v167, %v165
  %v212 = vpack.c.b16 %v170, %v168
  %v213 = vpack.c.b16 %v171, %v169
  %v214 = vpack.c.b16 %v174, %v172
  %v215 = vpack.c.b16 %v175, %v173
  %v216 = vpack.c.b16 %v178, %v176
  %v217 = vpack.c.b16 %v179, %v177
  %v218 = vpack.c.b16 %v182, %v180
  %v219 = vpack.c.b16 %v183, %v181
  %v220 = vpack.c.b16 %v186, %v184
  %v221 = vpack.c.b16 %v187, %v185
  %v222 = vpack.c.b16 %v190, %v188
  %v223 = vpack.c.b16 %v191, %v189
  %256 = vmatprep.subr.bf16.mxu0 %v207
  %257 = vmatpush1.bf16.msra.mxu0 %v206
  %258 = vmatprep.subr.bf16.mxu0 %v205
  %259 = vmatpush1.bf16.msra.mxu0 %v204
  %260 = vmatprep.subr.bf16.mxu0 %v203
  %261 = vmatpush1.bf16.msra.mxu0 %v202
  %262 = vmatprep.subr.bf16.mxu0 %v201
  %263 = vmatpush1.bf16.msra.mxu0 %v200
  %264 = vmatprep.subr.bf16.mxu0 %v199
  %265 = vmatpush1.bf16.msra.mxu0 %v198
  %266 = vmatprep.subr.bf16.mxu0 %v197
  %267 = vmatpush1.bf16.msra.mxu0 %v196
  %268 = vmatprep.subr.bf16.mxu0 %v195
  %269 = vmatpush1.bf16.msra.mxu0 %v194
  %270 = vmatprep.subr.bf16.mxu0 %v193
  %271 = vmatpush1.bf16.msra.mxu0 %v192
  %272 = vmatprep.subr.bf16.mxu0 %v223
  %273 = vmatpush2.bf16.msra.mxu0 %v222
  %274 = vmatprep.subr.bf16.mxu0 %v221
  %275 = vmatpush2.bf16.msra.mxu0 %v220
  %276 = vmatprep.subr.bf16.mxu0 %v219
  %277 = vmatpush2.bf16.msra.mxu0 %v218
  %278 = vmatprep.subr.bf16.mxu0 %v217
  %279 = vmatpush2.bf16.msra.mxu0 %v216
  %280 = vmatprep.subr.bf16.mxu0 %v215
  %281 = vmatpush2.bf16.msra.mxu0 %v214
  %282 = vmatprep.subr.bf16.mxu0 %v213
  %283 = vmatpush2.bf16.msra.mxu0 %v212
  %284 = vmatprep.subr.bf16.mxu0 %v211
  %285 = vmatpush2.bf16.msra.mxu0 %v210
  %286 = vmatprep.subr.bf16.mxu0 %v209
  %287 = vmatpush2.bf16.msra.mxu0 %v208
  %288 = vmatprep.mubr.bf16.mxu0 %v93
  %289 = vmatmul.mubr.bf16.gmra.mxu0 %v92
  %v290 = vpop.f32.mrf.mxu0
  %v291 = vadd.f32 0.0, %v290
  %v292 = vpop.f32.mrf.mxu0
  %v293 = vadd.f32 0.0, %v292
  %v294 = vpop.f32.mrf.mxu0
  %v295 = vpop.f32.mrf.mxu0
  %296 = vdwg.mxu0
  %v297 = vld [vmem:[%s2] sm:$0x3]
  %v299 = vlaneseq
  %v300 = vshrl.u32 %v299, 7
  %v301 = vsub.s32 0, %v300
  %v302 = vrot.slane %v297, %v301
  %v303 = vlaneseq
  %v304 = vshrl.u32 %v303, 7
  %v305 = vsub.s32 1, %v304
  %v306 = vrot.slane %v297, %v305
  %v309 = vmul.f32 %v291, %v302
  %v310 = vmul.f32 %v293, %v306
  %v311 = vld [vmem:[%s3] sm:$0x3]
  %v313 = vlaneseq
  %v314 = vshrl.u32 %v313, 7
  %v315 = vsub.s32 0, %v314
  %v316 = vrot.slane %v311, %v315
  %v317 = vlaneseq
  %v318 = vshrl.u32 %v317, 7
  %v319 = vsub.s32 1, %v318
  %v320 = vrot.slane %v311, %v319
  %v323 = vadd.f32 %v309, %v316
  %v324 = vadd.f32 %v310, %v320
  %vm325 = vcmp.gt.f32.partialorder %v323, 0.0
  %vm326 = vcmp.gt.f32.partialorder %v324, 0.0
  %v327 = vmul.f32 %v323, 0.01
  %v328 = vmul.f32 %v324, 0.01
  %v329 = vsel %vm325, %v323, %v327
  %v330 = vsel %vm326, %v324, %v328
  %v331 = vpack.c.bf16 %v329, %v329
  %v332 = vpack.c.bf16 %v330, %v330
  %v333 = vld [vmem:[%s4] sm:$0xff]
  %v334 = vld [vmem:[%s4 + $0x8] sm:$0xff]
  %v335 = vld [vmem:[%s4 + $0x10] sm:$0xff]
  %v336 = vld [vmem:[%s4 + $0x18] sm:$0xff]
  %v337 = vld [vmem:[%s4 + $0x20] sm:$0xff]
  %v338 = vld [vmem:[%s4 + $0x28] sm:$0xff]
  %v339 = vld [vmem:[%s4 + $0x30] sm:$0xff]
  %v340 = vld [vmem:[%s4 + $0x38] sm:$0xff]
  %v341 = vld [vmem:[%s4 + $0x40] sm:$0xff]
  %v342 = vld [vmem:[%s4 + $0x48] sm:$0xff]
  %v343 = vld [vmem:[%s4 + $0x50] sm:$0xff]
  %v344 = vld [vmem:[%s4 + $0x58] sm:$0xff]
  %v345 = vld [vmem:[%s4 + $0x60] sm:$0xff]
  %v346 = vld [vmem:[%s4 + $0x68] sm:$0xff]
  %v347 = vld [vmem:[%s4 + $0x70] sm:$0xff]
  %v348 = vld [vmem:[%s4 + $0x78] sm:$0xff]
  %v349 = vld [vmem:[%s4 + $0x80] sm:$0xff]
  %v350 = vld [vmem:[%s4 + $0x88] sm:$0xff]
  %v351 = vld [vmem:[%s4 + $0x90] sm:$0xff]
  %v352 = vld [vmem:[%s4 + $0x98] sm:$0xff]
  %v353 = vld [vmem:[%s4 + $0xa0] sm:$0xff]
  %v354 = vld [vmem:[%s4 + $0xa8] sm:$0xff]
  %v355 = vld [vmem:[%s4 + $0xb0] sm:$0xff]
  %v356 = vld [vmem:[%s4 + $0xb8] sm:$0xff]
  %v357 = vld [vmem:[%s4 + $0xc0] sm:$0xff]
  %v358 = vld [vmem:[%s4 + $0xc8] sm:$0xff]
  %v359 = vld [vmem:[%s4 + $0xd0] sm:$0xff]
  %v360 = vld [vmem:[%s4 + $0xd8] sm:$0xff]
  %v361 = vld [vmem:[%s4 + $0xe0] sm:$0xff]
  %v362 = vld [vmem:[%s4 + $0xe8] sm:$0xff]
  %v363 = vld [vmem:[%s4 + $0xf0] sm:$0xff]
  %v364 = vld [vmem:[%s4 + $0xf8] sm:$0xff]
  %v397 = vunpack.c.l.b16 %v333
  %v398 = vunpack.c.h.b16 %v333
  %v399 = vunpack.c.l.b16 %v334
  %v400 = vunpack.c.h.b16 %v334
  %v401 = vunpack.c.l.b16 %v335
  %v402 = vunpack.c.h.b16 %v335
  %v403 = vunpack.c.l.b16 %v336
  %v404 = vunpack.c.h.b16 %v336
  %v405 = vunpack.c.l.b16 %v337
  %v406 = vunpack.c.h.b16 %v337
  %v407 = vunpack.c.l.b16 %v338
  %v408 = vunpack.c.h.b16 %v338
  %v409 = vunpack.c.l.b16 %v339
  %v410 = vunpack.c.h.b16 %v339
  %v411 = vunpack.c.l.b16 %v340
  %v412 = vunpack.c.h.b16 %v340
  %v413 = vunpack.c.l.b16 %v341
  %v414 = vunpack.c.h.b16 %v341
  %v415 = vunpack.c.l.b16 %v342
  %v416 = vunpack.c.h.b16 %v342
  %v417 = vunpack.c.l.b16 %v343
  %v418 = vunpack.c.h.b16 %v343
  %v419 = vunpack.c.l.b16 %v344
  %v420 = vunpack.c.h.b16 %v344
  %v421 = vunpack.c.l.b16 %v345
  %v422 = vunpack.c.h.b16 %v345
  %v423 = vunpack.c.l.b16 %v346
  %v424 = vunpack.c.h.b16 %v346
  %v425 = vunpack.c.l.b16 %v347
  %v426 = vunpack.c.h.b16 %v347
  %v427 = vunpack.c.l.b16 %v348
  %v428 = vunpack.c.h.b16 %v348
  %v429 = vunpack.c.l.b16 %v349
  %v430 = vunpack.c.h.b16 %v349
  %v431 = vunpack.c.l.b16 %v350
  %v432 = vunpack.c.h.b16 %v350
  %v433 = vunpack.c.l.b16 %v351
  %v434 = vunpack.c.h.b16 %v351
  %v435 = vunpack.c.l.b16 %v352
  %v436 = vunpack.c.h.b16 %v352
  %v437 = vunpack.c.l.b16 %v353
  %v438 = vunpack.c.h.b16 %v353
  %v439 = vunpack.c.l.b16 %v354
  %v440 = vunpack.c.h.b16 %v354
  %v441 = vunpack.c.l.b16 %v355
  %v442 = vunpack.c.h.b16 %v355
  %v443 = vunpack.c.l.b16 %v356
  %v444 = vunpack.c.h.b16 %v356
  %v445 = vunpack.c.l.b16 %v357
  %v446 = vunpack.c.h.b16 %v357
  %v447 = vunpack.c.l.b16 %v358
  %v448 = vunpack.c.h.b16 %v358
  %v449 = vunpack.c.l.b16 %v359
  %v450 = vunpack.c.h.b16 %v359
  %v451 = vunpack.c.l.b16 %v360
  %v452 = vunpack.c.h.b16 %v360
  %v453 = vunpack.c.l.b16 %v361
  %v454 = vunpack.c.h.b16 %v361
  %v455 = vunpack.c.l.b16 %v362
  %v456 = vunpack.c.h.b16 %v362
  %v457 = vunpack.c.l.b16 %v363
  %v458 = vunpack.c.h.b16 %v363
  %v459 = vunpack.c.l.b16 %v364
  %v460 = vunpack.c.h.b16 %v364
  %v461 = vpack.c.b16 %v399, %v397
  %v462 = vpack.c.b16 %v400, %v398
  %v463 = vpack.c.b16 %v403, %v401
  %v464 = vpack.c.b16 %v404, %v402
  %v465 = vpack.c.b16 %v407, %v405
  %v466 = vpack.c.b16 %v408, %v406
  %v467 = vpack.c.b16 %v411, %v409
  %v468 = vpack.c.b16 %v412, %v410
  %v469 = vpack.c.b16 %v415, %v413
  %v470 = vpack.c.b16 %v416, %v414
  %v471 = vpack.c.b16 %v419, %v417
  %v472 = vpack.c.b16 %v420, %v418
  %v473 = vpack.c.b16 %v423, %v421
  %v474 = vpack.c.b16 %v424, %v422
  %v475 = vpack.c.b16 %v427, %v425
  %v476 = vpack.c.b16 %v428, %v426
  %v477 = vpack.c.b16 %v431, %v429
  %v478 = vpack.c.b16 %v432, %v430
  %v479 = vpack.c.b16 %v435, %v433
  %v480 = vpack.c.b16 %v436, %v434
  %v481 = vpack.c.b16 %v439, %v437
  %v482 = vpack.c.b16 %v440, %v438
  %v483 = vpack.c.b16 %v443, %v441
  %v484 = vpack.c.b16 %v444, %v442
  %v485 = vpack.c.b16 %v447, %v445
  %v486 = vpack.c.b16 %v448, %v446
  %v487 = vpack.c.b16 %v451, %v449
  %v488 = vpack.c.b16 %v452, %v450
  %v489 = vpack.c.b16 %v455, %v453
  %v490 = vpack.c.b16 %v456, %v454
  %v491 = vpack.c.b16 %v459, %v457
  %v492 = vpack.c.b16 %v460, %v458
  %525 = vmatprep.subr.bf16.mxu0 %v476
  %526 = vmatpush1.bf16.msra.mxu0 %v475
  %527 = vmatprep.subr.bf16.mxu0 %v474
  %528 = vmatpush1.bf16.msra.mxu0 %v473
  %529 = vmatprep.subr.bf16.mxu0 %v472
  %530 = vmatpush1.bf16.msra.mxu0 %v471
  %531 = vmatprep.subr.bf16.mxu0 %v470
  %532 = vmatpush1.bf16.msra.mxu0 %v469
  %533 = vmatprep.subr.bf16.mxu0 %v468
  %534 = vmatpush1.bf16.msra.mxu0 %v467
  %535 = vmatprep.subr.bf16.mxu0 %v466
  %536 = vmatpush1.bf16.msra.mxu0 %v465
  %537 = vmatprep.subr.bf16.mxu0 %v464
  %538 = vmatpush1.bf16.msra.mxu0 %v463
  %539 = vmatprep.subr.bf16.mxu0 %v462
  %540 = vmatpush1.bf16.msra.mxu0 %v461
  %541 = vmatprep.subr.bf16.mxu0 %v492
  %542 = vmatpush2.bf16.msra.mxu0 %v491
  %543 = vmatprep.subr.bf16.mxu0 %v490
  %544 = vmatpush2.bf16.msra.mxu0 %v489
  %545 = vmatprep.subr.bf16.mxu0 %v488
  %546 = vmatpush2.bf16.msra.mxu0 %v487
  %547 = vmatprep.subr.bf16.mxu0 %v486
  %548 = vmatpush2.bf16.msra.mxu0 %v485
  %549 = vmatprep.subr.bf16.mxu0 %v484
  %550 = vmatpush2.bf16.msra.mxu0 %v483
  %551 = vmatprep.subr.bf16.mxu0 %v482
  %552 = vmatpush2.bf16.msra.mxu0 %v481
  %553 = vmatprep.subr.bf16.mxu0 %v480
  %554 = vmatpush2.bf16.msra.mxu0 %v479
  %555 = vmatprep.subr.bf16.mxu0 %v478
  %556 = vmatpush2.bf16.msra.mxu0 %v477
  %557 = vmatprep.mubr.bf16.mxu0 %v332
  %558 = vmatmul.mubr.bf16.gmra.mxu0 %v331
  %v559 = vpop.f32.mrf.mxu0
  %v560 = vadd.f32 0.0, %v559
  %v561 = vpop.f32.mrf.mxu0
  %v562 = vadd.f32 0.0, %v561
  %v563 = vpop.f32.mrf.mxu0
  %v564 = vpop.f32.mrf.mxu0
  %565 = vdwg.mxu0
  %v566 = vld [vmem:[%s5] sm:$0x3]
  %v568 = vlaneseq
  %v569 = vshrl.u32 %v568, 7
  %v570 = vsub.s32 0, %v569
  %v571 = vrot.slane %v566, %v570
  %v572 = vlaneseq
  %v573 = vshrl.u32 %v572, 7
  %v574 = vsub.s32 1, %v573
  %v575 = vrot.slane %v566, %v574
  %v578 = vmul.f32 %v560, %v571
  %v579 = vmul.f32 %v562, %v575
  %v580 = vld [vmem:[%s6] sm:$0x3]
  %v582 = vlaneseq
  %v583 = vshrl.u32 %v582, 7
  %v584 = vsub.s32 0, %v583
  %v585 = vrot.slane %v580, %v584
  %v586 = vlaneseq
  %v587 = vshrl.u32 %v586, 7
  %v588 = vsub.s32 1, %v587
  %v589 = vrot.slane %v580, %v588
  %v592 = vadd.f32 %v578, %v585
  %v593 = vadd.f32 %v579, %v589
  %vm594 = vcmp.gt.f32.partialorder %v592, 0.0
  %vm595 = vcmp.gt.f32.partialorder %v593, 0.0
  %v596 = vmul.f32 %v592, 0.01
  %v597 = vmul.f32 %v593, 0.01
  %v598 = vsel %vm594, %v592, %v596
  %v599 = vsel %vm595, %v593, %v597
  %v600 = vpack.c.bf16 %v598, %v598
  %v601 = vpack.c.bf16 %v599, %v599
  %v602 = vld [vmem:[%s7] sm:$0xff]
  %v603 = vld [vmem:[%s7 + $0x8] sm:$0xff]
  %v604 = vld [vmem:[%s7 + $0x10] sm:$0xff]
  %v605 = vld [vmem:[%s7 + $0x18] sm:$0xff]
  %v606 = vld [vmem:[%s7 + $0x20] sm:$0xff]
  %v607 = vld [vmem:[%s7 + $0x28] sm:$0xff]
  %v608 = vld [vmem:[%s7 + $0x30] sm:$0xff]
  %v609 = vld [vmem:[%s7 + $0x38] sm:$0xff]
  %v610 = vld [vmem:[%s7 + $0x40] sm:$0xff]
  %v611 = vld [vmem:[%s7 + $0x48] sm:$0xff]
  %v612 = vld [vmem:[%s7 + $0x50] sm:$0xff]
  %v613 = vld [vmem:[%s7 + $0x58] sm:$0xff]
  %v614 = vld [vmem:[%s7 + $0x60] sm:$0xff]
  %v615 = vld [vmem:[%s7 + $0x68] sm:$0xff]
  %v616 = vld [vmem:[%s7 + $0x70] sm:$0xff]
  %v617 = vld [vmem:[%s7 + $0x78] sm:$0xff]
  %v618 = vld [vmem:[%s7 + $0x80] sm:$0xff]
  %v619 = vld [vmem:[%s7 + $0x88] sm:$0xff]
  %v620 = vld [vmem:[%s7 + $0x90] sm:$0xff]
  %v621 = vld [vmem:[%s7 + $0x98] sm:$0xff]
  %v622 = vld [vmem:[%s7 + $0xa0] sm:$0xff]
  %v623 = vld [vmem:[%s7 + $0xa8] sm:$0xff]
  %v624 = vld [vmem:[%s7 + $0xb0] sm:$0xff]
  %v625 = vld [vmem:[%s7 + $0xb8] sm:$0xff]
  %v626 = vld [vmem:[%s7 + $0xc0] sm:$0xff]
  %v627 = vld [vmem:[%s7 + $0xc8] sm:$0xff]
  %v628 = vld [vmem:[%s7 + $0xd0] sm:$0xff]
  %v629 = vld [vmem:[%s7 + $0xd8] sm:$0xff]
  %v630 = vld [vmem:[%s7 + $0xe0] sm:$0xff]
  %v631 = vld [vmem:[%s7 + $0xe8] sm:$0xff]
  %v632 = vld [vmem:[%s7 + $0xf0] sm:$0xff]
  %v633 = vld [vmem:[%s7 + $0xf8] sm:$0xff]
  %v666 = vunpack.c.l.b16 %v602
  %v667 = vunpack.c.h.b16 %v602
  %v668 = vunpack.c.l.b16 %v603
  %v669 = vunpack.c.h.b16 %v603
  %v670 = vunpack.c.l.b16 %v604
  %v671 = vunpack.c.h.b16 %v604
  %v672 = vunpack.c.l.b16 %v605
  %v673 = vunpack.c.h.b16 %v605
  %v674 = vunpack.c.l.b16 %v606
  %v675 = vunpack.c.h.b16 %v606
  %v676 = vunpack.c.l.b16 %v607
  %v677 = vunpack.c.h.b16 %v607
  %v678 = vunpack.c.l.b16 %v608
  %v679 = vunpack.c.h.b16 %v608
  %v680 = vunpack.c.l.b16 %v609
  %v681 = vunpack.c.h.b16 %v609
  %v682 = vunpack.c.l.b16 %v610
  %v683 = vunpack.c.h.b16 %v610
  %v684 = vunpack.c.l.b16 %v611
  %v685 = vunpack.c.h.b16 %v611
  %v686 = vunpack.c.l.b16 %v612
  %v687 = vunpack.c.h.b16 %v612
  %v688 = vunpack.c.l.b16 %v613
  %v689 = vunpack.c.h.b16 %v613
  %v690 = vunpack.c.l.b16 %v614
  %v691 = vunpack.c.h.b16 %v614
  %v692 = vunpack.c.l.b16 %v615
  %v693 = vunpack.c.h.b16 %v615
  %v694 = vunpack.c.l.b16 %v616
  %v695 = vunpack.c.h.b16 %v616
  %v696 = vunpack.c.l.b16 %v617
  %v697 = vunpack.c.h.b16 %v617
  %v698 = vunpack.c.l.b16 %v618
  %v699 = vunpack.c.h.b16 %v618
  %v700 = vunpack.c.l.b16 %v619
  %v701 = vunpack.c.h.b16 %v619
  %v702 = vunpack.c.l.b16 %v620
  %v703 = vunpack.c.h.b16 %v620
  %v704 = vunpack.c.l.b16 %v621
  %v705 = vunpack.c.h.b16 %v621
  %v706 = vunpack.c.l.b16 %v622
  %v707 = vunpack.c.h.b16 %v622
  %v708 = vunpack.c.l.b16 %v623
  %v709 = vunpack.c.h.b16 %v623
  %v710 = vunpack.c.l.b16 %v624
  %v711 = vunpack.c.h.b16 %v624
  %v712 = vunpack.c.l.b16 %v625
  %v713 = vunpack.c.h.b16 %v625
  %v714 = vunpack.c.l.b16 %v626
  %v715 = vunpack.c.h.b16 %v626
  %v716 = vunpack.c.l.b16 %v627
  %v717 = vunpack.c.h.b16 %v627
  %v718 = vunpack.c.l.b16 %v628
  %v719 = vunpack.c.h.b16 %v628
  %v720 = vunpack.c.l.b16 %v629
  %v721 = vunpack.c.h.b16 %v629
  %v722 = vunpack.c.l.b16 %v630
  %v723 = vunpack.c.h.b16 %v630
  %v724 = vunpack.c.l.b16 %v631
  %v725 = vunpack.c.h.b16 %v631
  %v726 = vunpack.c.l.b16 %v632
  %v727 = vunpack.c.h.b16 %v632
  %v728 = vunpack.c.l.b16 %v633
  %v729 = vunpack.c.h.b16 %v633
  %v730 = vpack.c.b16 %v668, %v666
  %v731 = vpack.c.b16 %v669, %v667
  %v732 = vpack.c.b16 %v672, %v670
  %v733 = vpack.c.b16 %v673, %v671
  %v734 = vpack.c.b16 %v676, %v674
  %v735 = vpack.c.b16 %v677, %v675
  %v736 = vpack.c.b16 %v680, %v678
  %v737 = vpack.c.b16 %v681, %v679
  %v738 = vpack.c.b16 %v684, %v682
  %v739 = vpack.c.b16 %v685, %v683
  %v740 = vpack.c.b16 %v688, %v686
  %v741 = vpack.c.b16 %v689, %v687
  %v742 = vpack.c.b16 %v692, %v690
  %v743 = vpack.c.b16 %v693, %v691
  %v744 = vpack.c.b16 %v696, %v694
  %v745 = vpack.c.b16 %v697, %v695
  %v746 = vpack.c.b16 %v700, %v698
  %v747 = vpack.c.b16 %v701, %v699
  %v748 = vpack.c.b16 %v704, %v702
  %v749 = vpack.c.b16 %v705, %v703
  %v750 = vpack.c.b16 %v708, %v706
  %v751 = vpack.c.b16 %v709, %v707
  %v752 = vpack.c.b16 %v712, %v710
  %v753 = vpack.c.b16 %v713, %v711
  %v754 = vpack.c.b16 %v716, %v714
  %v755 = vpack.c.b16 %v717, %v715
  %v756 = vpack.c.b16 %v720, %v718
  %v757 = vpack.c.b16 %v721, %v719
  %v758 = vpack.c.b16 %v724, %v722
  %v759 = vpack.c.b16 %v725, %v723
  %v760 = vpack.c.b16 %v728, %v726
  %v761 = vpack.c.b16 %v729, %v727
  %794 = vmatprep.subr.bf16.mxu0 %v745
  %795 = vmatpush1.bf16.msra.mxu0 %v744
  %796 = vmatprep.subr.bf16.mxu0 %v743
  %797 = vmatpush1.bf16.msra.mxu0 %v742
  %798 = vmatprep.subr.bf16.mxu0 %v741
  %799 = vmatpush1.bf16.msra.mxu0 %v740
  %800 = vmatprep.subr.bf16.mxu0 %v739
  %801 = vmatpush1.bf16.msra.mxu0 %v738
  %802 = vmatprep.subr.bf16.mxu0 %v737
  %803 = vmatpush1.bf16.msra.mxu0 %v736
  %804 = vmatprep.subr.bf16.mxu0 %v735
  %805 = vmatpush1.bf16.msra.mxu0 %v734
  %806 = vmatprep.subr.bf16.mxu0 %v733
  %807 = vmatpush1.bf16.msra.mxu0 %v732
  %808 = vmatprep.subr.bf16.mxu0 %v731
  %809 = vmatpush1.bf16.msra.mxu0 %v730
  %810 = vmatprep.subr.bf16.mxu0 %v761
  %811 = vmatpush2.bf16.msra.mxu0 %v760
  %812 = vmatprep.subr.bf16.mxu0 %v759
  %813 = vmatpush2.bf16.msra.mxu0 %v758
  %814 = vmatprep.subr.bf16.mxu0 %v757
  %815 = vmatpush2.bf16.msra.mxu0 %v756
  %816 = vmatprep.subr.bf16.mxu0 %v755
  %817 = vmatpush2.bf16.msra.mxu0 %v754
  %818 = vmatprep.subr.bf16.mxu0 %v753
  %819 = vmatpush2.bf16.msra.mxu0 %v752
  %820 = vmatprep.subr.bf16.mxu0 %v751
  %821 = vmatpush2.bf16.msra.mxu0 %v750
  %822 = vmatprep.subr.bf16.mxu0 %v749
  %823 = vmatpush2.bf16.msra.mxu0 %v748
  %824 = vmatprep.subr.bf16.mxu0 %v747
  %825 = vmatpush2.bf16.msra.mxu0 %v746
  %826 = vmatprep.mubr.bf16.mxu0 %v601
  %827 = vmatmul.mubr.bf16.gmra.mxu0 %v600
  %v828 = vpop.f32.mrf.mxu0
  %v829 = vadd.f32 0.0, %v828
  %v830 = vpop.f32.mrf.mxu0
  %v831 = vadd.f32 0.0, %v830
  %v832 = vpop.f32.mrf.mxu0
  %v833 = vpop.f32.mrf.mxu0
  %834 = vdwg.mxu0
  %v835 = vld [vmem:[%s8] sm:$0x3]
  %v837 = vlaneseq
  %v838 = vshrl.u32 %v837, 7
  %v839 = vsub.s32 0, %v838
  %v840 = vrot.slane %v835, %v839
  %v841 = vlaneseq
  %v842 = vshrl.u32 %v841, 7
  %v843 = vsub.s32 1, %v842
  %v844 = vrot.slane %v835, %v843
  %v847 = vmul.f32 %v829, %v840
  %v848 = vmul.f32 %v831, %v844
  %v849 = vld [vmem:[%s9] sm:$0x3]
  %v851 = vlaneseq
  %v852 = vshrl.u32 %v851, 7
  %v853 = vsub.s32 0, %v852
  %v854 = vrot.slane %v849, %v853
  %v855 = vlaneseq
  %v856 = vshrl.u32 %v855, 7
  %v857 = vsub.s32 1, %v856
  %v858 = vrot.slane %v849, %v857
  %v861 = vadd.f32 %v847, %v854
  %v862 = vadd.f32 %v848, %v858
  %863 = vst [vmem:[%s16] sm:$0xff] %v861
  %864 = vst [vmem:[%s16 + $0x8] sm:$0xff] %v862
  %v865 = vpack.c.bf16 %v861, %v861
  %v866 = vpack.c.bf16 %v862, %v862
  %v867 = vld [vmem:[%s10] sm:$0xf]
  %v868 = vld [vmem:[%s10 + $0x4] sm:$0xf]
  %v869 = vld [vmem:[%s10 + $0x8] sm:$0xf]
  %v870 = vld [vmem:[%s10 + $0xc] sm:$0xf]
  %v871 = vld [vmem:[%s10 + $0x10] sm:$0xf]
  %v872 = vld [vmem:[%s10 + $0x14] sm:$0xf]
  %v873 = vld [vmem:[%s10 + $0x18] sm:$0xf]
  %v874 = vld [vmem:[%s10 + $0x1c] sm:$0xf]
  %v875 = vld [vmem:[%s10 + $0x20] sm:$0xf]
  %v876 = vld [vmem:[%s10 + $0x24] sm:$0xf]
  %v877 = vld [vmem:[%s10 + $0x28] sm:$0xf]
  %v878 = vld [vmem:[%s10 + $0x2c] sm:$0xf]
  %v879 = vld [vmem:[%s10 + $0x30] sm:$0xf]
  %v880 = vld [vmem:[%s10 + $0x34] sm:$0xf]
  %v881 = vld [vmem:[%s10 + $0x38] sm:$0xf]
  %v882 = vld [vmem:[%s10 + $0x3c] sm:$0xf]
  %v883 = vld [vmem:[%s10 + $0x40] sm:$0xf]
  %v884 = vld [vmem:[%s10 + $0x44] sm:$0xf]
  %v885 = vld [vmem:[%s10 + $0x48] sm:$0xf]
  %v886 = vld [vmem:[%s10 + $0x4c] sm:$0xf]
  %v887 = vld [vmem:[%s10 + $0x50] sm:$0xf]
  %v888 = vld [vmem:[%s10 + $0x54] sm:$0xf]
  %v889 = vld [vmem:[%s10 + $0x58] sm:$0xf]
  %v890 = vld [vmem:[%s10 + $0x5c] sm:$0xf]
  %v891 = vld [vmem:[%s10 + $0x60] sm:$0xf]
  %v892 = vld [vmem:[%s10 + $0x64] sm:$0xf]
  %v893 = vld [vmem:[%s10 + $0x68] sm:$0xf]
  %v894 = vld [vmem:[%s10 + $0x6c] sm:$0xf]
  %v895 = vld [vmem:[%s10 + $0x70] sm:$0xf]
  %v896 = vld [vmem:[%s10 + $0x74] sm:$0xf]
  %v897 = vld [vmem:[%s10 + $0x78] sm:$0xf]
  %v898 = vld [vmem:[%s10 + $0x7c] sm:$0xf]
  %v931 = vunpack.c.l.b16 %v867
  %v932 = vunpack.c.l.b16 %v868
  %v933 = vunpack.c.l.b16 %v869
  %v934 = vunpack.c.l.b16 %v870
  %v935 = vunpack.c.l.b16 %v871
  %v936 = vunpack.c.l.b16 %v872
  %v937 = vunpack.c.l.b16 %v873
  %v938 = vunpack.c.l.b16 %v874
  %v939 = vunpack.c.l.b16 %v875
  %v940 = vunpack.c.l.b16 %v876
  %v941 = vunpack.c.l.b16 %v877
  %v942 = vunpack.c.l.b16 %v878
  %v943 = vunpack.c.l.b16 %v879
  %v944 = vunpack.c.l.b16 %v880
  %v945 = vunpack.c.l.b16 %v881
  %v946 = vunpack.c.l.b16 %v882
  %v947 = vunpack.c.l.b16 %v883
  %v948 = vunpack.c.l.b16 %v884
  %v949 = vunpack.c.l.b16 %v885
  %v950 = vunpack.c.l.b16 %v886
  %v951 = vunpack.c.l.b16 %v887
  %v952 = vunpack.c.l.b16 %v888
  %v953 = vunpack.c.l.b16 %v889
  %v954 = vunpack.c.l.b16 %v890
  %v955 = vunpack.c.l.b16 %v891
  %v956 = vunpack.c.l.b16 %v892
  %v957 = vunpack.c.l.b16 %v893
  %v958 = vunpack.c.l.b16 %v894
  %v959 = vunpack.c.l.b16 %v895
  %v960 = vunpack.c.l.b16 %v896
  %v961 = vunpack.c.l.b16 %v897
  %v962 = vunpack.c.l.b16 %v898
  %v963 = vpack.c.b16 %v932, %v931
  %v964 = vpack.c.b16 %v934, %v933
  %v965 = vpack.c.b16 %v936, %v935
  %v966 = vpack.c.b16 %v938, %v937
  %v967 = vpack.c.b16 %v940, %v939
  %v968 = vpack.c.b16 %v942, %v941
  %v969 = vpack.c.b16 %v944, %v943
  %v970 = vpack.c.b16 %v946, %v945
  %v971 = vpack.c.b16 %v948, %v947
  %v972 = vpack.c.b16 %v950, %v949
  %v973 = vpack.c.b16 %v952, %v951
  %v974 = vpack.c.b16 %v954, %v953
  %v975 = vpack.c.b16 %v956, %v955
  %v976 = vpack.c.b16 %v958, %v957
  %v977 = vpack.c.b16 %v960, %v959
  %v978 = vpack.c.b16 %v962, %v961
  %995 = vmatprep.subr.bf16.mxu0 0
  %996 = vmatpush1.bf16.msra.mxu0 %v970
  %997 = vmatprep.subr.bf16.mxu0 0
  %998 = vmatpush1.bf16.msra.mxu0 %v969
  %999 = vmatprep.subr.bf16.mxu0 0
  %1000 = vmatpush1.bf16.msra.mxu0 %v968
  %1001 = vmatprep.subr.bf16.mxu0 0
  %1002 = vmatpush1.bf16.msra.mxu0 %v967
  %1003 = vmatprep.subr.bf16.mxu0 0
  %1004 = vmatpush1.bf16.msra.mxu0 %v966
  %1005 = vmatprep.subr.bf16.mxu0 0
  %1006 = vmatpush1.bf16.msra.mxu0 %v965
  %1007 = vmatprep.subr.bf16.mxu0 0
  %1008 = vmatpush1.bf16.msra.mxu0 %v964
  %1009 = vmatprep.subr.bf16.mxu0 0
  %1010 = vmatpush1.bf16.msra.mxu0 %v963
  %1011 = vmatprep.subr.bf16.mxu0 0
  %1012 = vmatpush2.bf16.msra.mxu0 %v978
  %1013 = vmatprep.subr.bf16.mxu0 0
  %1014 = vmatpush2.bf16.msra.mxu0 %v977
  %1015 = vmatprep.subr.bf16.mxu0 0
  %1016 = vmatpush2.bf16.msra.mxu0 %v976
  %1017 = vmatprep.subr.bf16.mxu0 0
  %1018 = vmatpush2.bf16.msra.mxu0 %v975
  %1019 = vmatprep.subr.bf16.mxu0 0
  %1020 = vmatpush2.bf16.msra.mxu0 %v974
  %1021 = vmatprep.subr.bf16.mxu0 0
  %1022 = vmatpush2.bf16.msra.mxu0 %v973
  %1023 = vmatprep.subr.bf16.mxu0 0
  %1024 = vmatpush2.bf16.msra.mxu0 %v972
  %1025 = vmatprep.subr.bf16.mxu0 0
  %1026 = vmatpush2.bf16.msra.mxu0 %v971
  %1027 = vmatprep.mubr.bf16.mxu0 %v866
  %1028 = vmatmul.mubr.bf16.gmra.mxu0 %v865
  %v1029 = vpop.f32.mrf.mxu0
  %v1030 = vadd.f32 0.0, %v1029
  %v1031 = vpop.f32.mrf.mxu0
  %v1032 = vpop.f32.mrf.mxu0
  %v1033 = vpop.f32.mrf.mxu0
  %1034 = vdwg.mxu0
  %v1035 = vld [vmem:[%s11] sm:$0x1]
  %v1037 = vlaneseq
  %v1038 = vshrl.u32 %v1037, 7
  %v1039 = vsub.s32 0, %v1038
  %v1040 = vrot.slane %v1035, %v1039
  %v1042 = vmul.f32 %v1030, %v1040
  %v1043 = vld [vmem:[%s12] sm:$0x1]
  %v1045 = vlaneseq
  %v1046 = vshrl.u32 %v1045, 7
  %v1047 = vsub.s32 0, %v1046
  %v1048 = vrot.slane %v1043, %v1047
  %v1050 = vadd.f32 %v1042, %v1048
  %vm1051 = vcmp.gt.f32.partialorder %v1050, 0.0
  %v1052 = vmul.f32 %v1050, 0.01
  %v1053 = vsel %vm1051, %v1050, %v1052
  %v1054 = vpack.c.bf16 %v1053, %v1053
  %v1055 = vld [vmem:[%s13] sm:$0xff]
  %v1056 = vld [vmem:[%s13 + $0x8] sm:$0xff]
  %v1057 = vld [vmem:[%s13 + $0x10] sm:$0xff]
  %v1058 = vld [vmem:[%s13 + $0x18] sm:$0xff]
  %v1059 = vld [vmem:[%s13 + $0x20] sm:$0xff]
  %v1060 = vld [vmem:[%s13 + $0x28] sm:$0xff]
  %v1061 = vld [vmem:[%s13 + $0x30] sm:$0xff]
  %v1062 = vld [vmem:[%s13 + $0x38] sm:$0xff]
  %v1063 = vld [vmem:[%s13 + $0x40] sm:$0xff]
  %v1064 = vld [vmem:[%s13 + $0x48] sm:$0xff]
  %v1065 = vld [vmem:[%s13 + $0x50] sm:$0xff]
  %v1066 = vld [vmem:[%s13 + $0x58] sm:$0xff]
  %v1067 = vld [vmem:[%s13 + $0x60] sm:$0xff]
  %v1068 = vld [vmem:[%s13 + $0x68] sm:$0xff]
  %v1069 = vld [vmem:[%s13 + $0x70] sm:$0xff]
  %v1070 = vld [vmem:[%s13 + $0x78] sm:$0xff]
  %v1087 = vunpack.c.l.b16 %v1055
  %v1088 = vunpack.c.h.b16 %v1055
  %v1089 = vunpack.c.l.b16 %v1056
  %v1090 = vunpack.c.h.b16 %v1056
  %v1091 = vunpack.c.l.b16 %v1057
  %v1092 = vunpack.c.h.b16 %v1057
  %v1093 = vunpack.c.l.b16 %v1058
  %v1094 = vunpack.c.h.b16 %v1058
  %v1095 = vunpack.c.l.b16 %v1059
  %v1096 = vunpack.c.h.b16 %v1059
  %v1097 = vunpack.c.l.b16 %v1060
  %v1098 = vunpack.c.h.b16 %v1060
  %v1099 = vunpack.c.l.b16 %v1061
  %v1100 = vunpack.c.h.b16 %v1061
  %v1101 = vunpack.c.l.b16 %v1062
  %v1102 = vunpack.c.h.b16 %v1062
  %v1103 = vunpack.c.l.b16 %v1063
  %v1104 = vunpack.c.h.b16 %v1063
  %v1105 = vunpack.c.l.b16 %v1064
  %v1106 = vunpack.c.h.b16 %v1064
  %v1107 = vunpack.c.l.b16 %v1065
  %v1108 = vunpack.c.h.b16 %v1065
  %v1109 = vunpack.c.l.b16 %v1066
  %v1110 = vunpack.c.h.b16 %v1066
  %v1111 = vunpack.c.l.b16 %v1067
  %v1112 = vunpack.c.h.b16 %v1067
  %v1113 = vunpack.c.l.b16 %v1068
  %v1114 = vunpack.c.h.b16 %v1068
  %v1115 = vunpack.c.l.b16 %v1069
  %v1116 = vunpack.c.h.b16 %v1069
  %v1117 = vunpack.c.l.b16 %v1070
  %v1118 = vunpack.c.h.b16 %v1070
  %v1119 = vpack.c.b16 %v1089, %v1087
  %v1120 = vpack.c.b16 %v1090, %v1088
  %v1121 = vpack.c.b16 %v1093, %v1091
  %v1122 = vpack.c.b16 %v1094, %v1092
  %v1123 = vpack.c.b16 %v1097, %v1095
  %v1124 = vpack.c.b16 %v1098, %v1096
  %v1125 = vpack.c.b16 %v1101, %v1099
  %v1126 = vpack.c.b16 %v1102, %v1100
  %v1127 = vpack.c.b16 %v1105, %v1103
  %v1128 = vpack.c.b16 %v1106, %v1104
  %v1129 = vpack.c.b16 %v1109, %v1107
  %v1130 = vpack.c.b16 %v1110, %v1108
  %v1131 = vpack.c.b16 %v1113, %v1111
  %v1132 = vpack.c.b16 %v1114, %v1112
  %v1133 = vpack.c.b16 %v1117, %v1115
  %v1134 = vpack.c.b16 %v1118, %v1116
  %1151 = vmatprep.subr.bf16.mxu0 %v1134
  %1152 = vmatpush1.bf16.msra.mxu0 %v1133
  %1153 = vmatprep.subr.bf16.mxu0 %v1132
  %1154 = vmatpush1.bf16.msra.mxu0 %v1131
  %1155 = vmatprep.subr.bf16.mxu0 %v1130
  %1156 = vmatpush1.bf16.msra.mxu0 %v1129
  %1157 = vmatprep.subr.bf16.mxu0 %v1128
  %1158 = vmatpush1.bf16.msra.mxu0 %v1127
  %1159 = vmatprep.subr.bf16.mxu0 %v1126
  %1160 = vmatpush1.bf16.msra.mxu0 %v1125
  %1161 = vmatprep.subr.bf16.mxu0 %v1124
  %1162 = vmatpush1.bf16.msra.mxu0 %v1123
  %1163 = vmatprep.subr.bf16.mxu0 %v1122
  %1164 = vmatpush1.bf16.msra.mxu0 %v1121
  %1165 = vmatprep.subr.bf16.mxu0 %v1120
  %1166 = vmatpush1.bf16.msra.mxu0 %v1119
  %1167 = vmatprep.subr.bf16.mxu0 0
  %1168 = vmatpush2.bf16.msra.mxu0 0
  %1169 = vmatprep.subr.bf16.mxu0 0
  %1170 = vmatpush2.bf16.msra.mxu0 0
  %1171 = vmatprep.subr.bf16.mxu0 0
  %1172 = vmatpush2.bf16.msra.mxu0 0
  %1173 = vmatprep.subr.bf16.mxu0 0
  %1174 = vmatpush2.bf16.msra.mxu0 0
  %1175 = vmatprep.subr.bf16.mxu0 0
  %1176 = vmatpush2.bf16.msra.mxu0 0
  %1177 = vmatprep.subr.bf16.mxu0 0
  %1178 = vmatpush2.bf16.msra.mxu0 0
  %1179 = vmatprep.subr.bf16.mxu0 0
  %1180 = vmatpush2.bf16.msra.mxu0 0
  %1181 = vmatprep.subr.bf16.mxu0 0
  %1182 = vmatpush2.bf16.msra.mxu0 0
  %1183 = vmatprep.mubr.bf16.mxu0 0
  %1184 = vmatmul.mubr.bf16.gmra.mxu0 %v1054
  %v1185 = vpop.f32.mrf.mxu0
  %v1186 = vadd.f32 0.0, %v1185
  %v1187 = vpop.f32.mrf.mxu0
  %v1188 = vadd.f32 0.0, %v1187
  %v1189 = vpop.f32.mrf.mxu0
  %v1190 = vpop.f32.mrf.mxu0
  %1191 = vdwg.mxu0
  %v1192 = vld [vmem:[%s14] sm:$0x3]
  %v1194 = vlaneseq
  %v1195 = vshrl.u32 %v1194, 7
  %v1196 = vsub.s32 0, %v1195
  %v1197 = vrot.slane %v1192, %v1196
  %v1198 = vlaneseq
  %v1199 = vshrl.u32 %v1198, 7
  %v1200 = vsub.s32 1, %v1199
  %v1201 = vrot.slane %v1192, %v1200
  %v1204 = vmul.f32 %v1186, %v1197
  %v1205 = vmul.f32 %v1188, %v1201
  %v1206 = vld [vmem:[%s15] sm:$0x3]
  %v1208 = vlaneseq
  %v1209 = vshrl.u32 %v1208, 7
  %v1210 = vsub.s32 0, %v1209
  %v1211 = vrot.slane %v1206, %v1210
  %v1212 = vlaneseq
  %v1213 = vshrl.u32 %v1212, 7
  %v1214 = vsub.s32 1, %v1213
  %v1215 = vrot.slane %v1206, %v1214
  %v1218 = vadd.f32 %v1204, %v1211
  %v1219 = vadd.f32 %v1205, %v1215
  %1220 = vst [vmem:[%s17] sm:$0xff] %v1218
  %1221 = vst [vmem:[%s17 + $0x8] sm:$0xff] %v1219
  // Predicated region
  $region66: #{simsiam_forward.1} parent=0 // pred_check
    _
  $region67: #{simsiam_forward.1} parent=0 // pred_check_branch
    %1223 = sbr.rel (0) target = $region69
  $region68: #{simsiam_forward.1} parent=0 // pred_region
    _
  $region69: #{simsiam_forward.1} parent=0 // pred_fallthru
    _
  // Predicated region
  $region70: #{simsiam_forward.1} parent=0 // pred_check
    _
  $region71: #{simsiam_forward.1} parent=0 // pred_check_branch
    %1225 = sbr.rel (0) target = $region73
  $region72: #{simsiam_forward.1} parent=0 // pred_region
    _
  $region73: #{simsiam_forward.1} parent=0 // pred_fallthru
    _
  // Predicated region
  $region74: #{simsiam_forward.1} parent=0 // pred_check
    _
  $region75: #{simsiam_forward.1} parent=0 // pred_check_branch
    %1227 = sbr.rel (0) target = $region77
  $region76: #{simsiam_forward.1} parent=0 // pred_region
    _
  $region77: #{simsiam_forward.1} parent=0 // pred_fallthru
    _
  // Predicated region
  $region78: #{simsiam_forward.1} parent=0 // pred_check
    _
  $region79: #{simsiam_forward.1} parent=0 // pred_check_branch
    %1229 = sbr.rel (0) target = $region81
  $region80: #{simsiam_forward.1} parent=0 // pred_region
    _
  $region81: #{simsiam_forward.1} parent=0 // pred_fallthru
    _

</llo_original>
